<compile_context>
chip_gen: v5e
topology: v5e:2x2
jax: 0.10.0
libtpu: 0.0.40
codegen_flags: <defaults>
</compile_context>

<pallas_src>
import jax
import jax.numpy as jnp
from jax.experimental import pallas as pl
from jax.experimental.pallas import tpu as pltpu

LANES = 128
SUBLANES = 8


def _round_up(x, m):
    return ((x + m - 1) // m) * m


def recons_loss(images, reconstructions, theta, *, max_tile_rows=1024, core_splits=2):
    """theta * sum((reconstructions.reshape(images.shape) - images)**2)."""
    assert images.size == reconstructions.size, (images.shape, reconstructions.shape)

    # Row-major flatten (== torch .contiguous().view()).
    x = images.reshape(-1)
    y = reconstructions.reshape(-1)
    n = x.shape[0]

    # Lane-dense (rows, 128) view. Pad only when n is not a multiple of 128
    # (at most 127 elements); identical zero padding contributes 0 to the loss.
    rows = pl.cdiv(n, LANES)
    padded_n = rows * LANES
    pad = padded_n - n
    if pad:
        x = jnp.pad(x, (0, pad))
        y = jnp.pad(y, (0, pad))
    x2 = x.reshape(rows, LANES)
    y2 = y.reshape(rows, LANES)

    # Tile rows: multiple of 8 sublanes, never larger than the array itself.
    if rows < SUBLANES:
        tile_rows = rows                                   # full array dim
    else:
        tile_rows = min(max_tile_rows, (rows // SUBLANES) * SUBLANES)
    total_tiles = pl.cdiv(rows, tile_rows)

    # Split row-tiles across TensorCores (v7x has 2; neutral on v5e/v6e).
    splits = core_splits if total_tiles >= core_splits else 1
    tiles_per_split = pl.cdiv(total_tiles, splits)
    grid = (splits, tiles_per_split)

    def in_index_map(c, i):
        t = c * tiles_per_split + i
        # Clamp so an over-split logical tile never points out of bounds; its
        # contribution is masked to zero inside the kernel.
        return (jnp.minimum(t, total_tiles - 1), 0)

    def kernel(img_ref, rec_ref, out_ref, acc_ref):
        c = pl.program_id(0)
        i = pl.program_id(1)

        @pl.when(i == 0)
        def _():
            acc_ref[...] = jnp.zeros_like(acc_ref)

        # Row mask: ragged last tile + duplicated over-split tiles.
        logical_tile = c * tiles_per_split + i
        row_ids = logical_tile * tile_rows + jax.lax.broadcasted_iota(
            jnp.int32, (tile_rows, LANES), 0)
        valid = row_ids < rows

        xi = img_ref[...].astype(jnp.float32)
        yi = rec_ref[...].astype(jnp.float32)
        d = jnp.where(valid, yi - xi, 0.0)
        acc_ref[...] += d * d                              # pure VPU per step

        @pl.when(i == pl.num_programs(1) - 1)
        def _():
            out_ref[0, 0] = jnp.sum(acc_ref[...])          # single final reduce

    compiler_kwargs = dict(
        dimension_semantics=("parallel", "arbitrary"),
        vmem_limit_bytes=32 << 20,
    )
    if pad:
        # Let XLA fuse the small tail pad into the kernel's input DMAs.
        compiler_kwargs["allow_input_fusion"] = [True, True]

    partials = pl.pallas_call(
        kernel,
        out_shape=jax.ShapeDtypeStruct((splits, 1), jnp.float32),
        grid_spec=pltpu.PrefetchScalarGridSpec(
            num_scalar_prefetch=0,
            grid=grid,
            in_specs=[
                pl.BlockSpec((tile_rows, LANES), in_index_map),
                pl.BlockSpec((tile_rows, LANES), in_index_map),
            ],
            out_specs=pl.BlockSpec(
                (1, 1), lambda c, i: (c, 0), memory_space=pltpu.MemorySpace.SMEM
            ),
            scratch_shapes=[pltpu.VMEM((tile_rows, LANES), jnp.float32)],
        ),
        compiler_params=pltpu.CompilerParams(**compiler_kwargs),
        cost_estimate=pl.CostEstimate(
            flops=3 * padded_n + 1,
            transcendentals=0,
            bytes_accessed=padded_n * (x2.dtype.itemsize + y2.dtype.itemsize)
            + 4 * splits,
        ),
    )(x2, y2)

    # theta applied outside the kernel (safe for python or traced scalars).
    return jnp.asarray(theta, jnp.float32) * jnp.sum(partials)


def recons_loss_ref(images, reconstructions, theta):
    recon = reconstructions.reshape(images.shape).astype(jnp.float32)
    img = images.astype(jnp.float32)
    return jnp.float32(theta) * jnp.sum((recon - img) ** 2)


if __name__ == "__main__":
    key = jax.random.PRNGKey(0)
    k1, k2 = jax.random.split(key)

    # Shapes consistent with the module: images (B, C, H, W), decoder output
    # flattened per example and .view()'d back.
    B, C, H, W = 2, 4, 16, 16
    theta = 0.5
    images = jax.random.uniform(k1, (B, C, H, W), dtype=jnp.float32)
    reconstructions = jax.random.uniform(k2, (B, C * H * W), dtype=jnp.float32)

    out = jax.block_until_ready(recons_loss(images, reconstructions, theta))
    ref = recons_loss_ref(images, reconstructions, theta)
    assert jnp.allclose(out, ref, rtol=1e-5, atol=1e-5), (out, ref)

    # Ragged case: exercises the <128-element tail pad, the masked partial
    # last tile, and the two-way core split.
    B2, C2, H2, W2 = 3, 5, 17, 19
    img2 = jax.random.normal(k1, (B2, C2, H2, W2), dtype=jnp.float32)
    rec2 = jax.random.normal(k2, (B2, C2 * H2 * W2), dtype=jnp.float32)
    out2 = jax.block_until_ready(recons_loss(img2, rec2, 1.25))
    ref2 = recons_loss_ref(img2, rec2, 1.25)
    assert jnp.allclose(out2, ref2, rtol=1e-4, atol=1e-4), (out2, ref2)

    print("KERNEL_OK")
</pallas_src>

<mosaic_0001>
module attributes {stable_mosaic.version = 11 : i64} {
  func.func @kernel(%arg0: i32, %arg1: i32, %arg2: memref<16x128xf32, #tpu.memory_space<vmem>>, %arg3: memref<16x128xf32, #tpu.memory_space<vmem>>, %arg4: memref<1x1xf32, #tpu.memory_space<smem>>, %arg5: memref<16x128xf32, #tpu.memory_space<vmem>>) attributes {dimension_semantics = [#tpu.dimension_semantics<parallel>, #tpu.dimension_semantics<arbitrary>], iteration_bounds = array<i64: 1, 1>, scalar_prefetch = 0 : i64, scratch_operands = 1 : i64, tpu.core_type = #tpu.core_type<tc>, window_params = [{transform_indices = @transform_0, window_bounds = array<i64: 16, 128>}, {transform_indices = @transform_1, window_bounds = array<i64: 16, 128>}, {transform_indices = @transform_2, window_bounds = array<i64: 1, 1>}]} {
    %c0_i32 = arith.constant 0 : i32
    %0 = arith.cmpi eq, %arg1, %c0_i32 : i32
    %1 = arith.extui %0 : i1 to i32
    %c0_i32_0 = arith.constant 0 : i32
    %2 = arith.cmpi ne, %1, %c0_i32_0 : i32
    scf.if %2 {
      %cst_11 = arith.constant 0.000000e+00 : f32
      %23 = vector.broadcast %cst_11 : f32 to vector<16x128xf32>
      %c0_12 = arith.constant 0 : index
      %c0_13 = arith.constant 0 : index
      %24 = vector.load %arg5[%c0_12, %c0_13] : memref<16x128xf32, #tpu.memory_space<vmem>>, vector<16x128xf32>
      tpu.vector_store %arg5[%c0_12, %c0_13], %23 {strides = array<i32>} : memref<16x128xf32, #tpu.memory_space<vmem>>, vector<16x128xf32>,
    } else {
    }
    %c1_i32 = arith.constant 1 : i32
    %3 = arith.muli %arg0, %c1_i32 : i32
    %4 = arith.addi %3, %arg1 : i32
    %c16_i32 = arith.constant 16 : i32
    %5 = arith.muli %4, %c16_i32 : i32
    %6 = tpu.iota {dimensions = array<i32: 0>} : vector<16x128xi32>
    %7 = vector.broadcast %5 : i32 to vector<16x128xi32>
    %8 = arith.addi %7, %6 : vector<16x128xi32>
    %c16_i32_1 = arith.constant 16 : i32
    %9 = vector.broadcast %c16_i32_1 : i32 to vector<16x128xi32>
    %10 = arith.cmpi slt, %8, %9 : vector<16x128xi32>
    %c0 = arith.constant 0 : index
    %c0_2 = arith.constant 0 : index
    %11 = vector.load %arg2[%c0, %c0_2] : memref<16x128xf32, #tpu.memory_space<vmem>>, vector<16x128xf32>
    %c0_3 = arith.constant 0 : index
    %c0_4 = arith.constant 0 : index
    %12 = vector.load %arg3[%c0_3, %c0_4] : memref<16x128xf32, #tpu.memory_space<vmem>>, vector<16x128xf32>
    %13 = arith.subf %12, %11 : vector<16x128xf32>
    %cst = arith.constant 0.000000e+00 : f32
    %14 = vector.broadcast %cst : f32 to vector<16x128xf32>
    %15 = arith.select %10, %13, %14 : vector<16x128xi1>, vector<16x128xf32>
    %c0_5 = arith.constant 0 : index
    %c0_6 = arith.constant 0 : index
    %16 = vector.load %arg5[%c0_5, %c0_6] : memref<16x128xf32, #tpu.memory_space<vmem>>, vector<16x128xf32>
    %17 = arith.mulf %15, %15 : vector<16x128xf32>
    %18 = arith.addf %16, %17 : vector<16x128xf32>
    %c0_7 = arith.constant 0 : index
    %c0_8 = arith.constant 0 : index
    %19 = vector.load %arg5[%c0_7, %c0_8] : memref<16x128xf32, #tpu.memory_space<vmem>>, vector<16x128xf32>
    tpu.vector_store %arg5[%c0_7, %c0_8], %18 {strides = array<i32>} : memref<16x128xf32, #tpu.memory_space<vmem>>, vector<16x128xf32>,
    %c0_i32_9 = arith.constant 0 : i32
    %20 = arith.cmpi eq, %arg1, %c0_i32_9 : i32
    %21 = arith.extui %20 : i1 to i32
    %c0_i32_10 = arith.constant 0 : i32
    %22 = arith.cmpi ne, %21, %c0_i32_10 : i32
    scf.if %22 {
      %c0_11 = arith.constant 0 : index
      %c0_12 = arith.constant 0 : index
      %23 = vector.load %arg5[%c0_11, %c0_12] : memref<16x128xf32, #tpu.memory_space<vmem>>, vector<16x128xf32>
      %24 = vector.shape_cast %23 : vector<16x128xf32> to vector<1x16x128xf32>
      %cst_13 = arith.constant dense<0.000000e+00> : vector<1xf32>
      %25 = vector.multi_reduction <add>, %24, %cst_13 [1, 2] : vector<1x16x128xf32> to vector<1xf32>
      %26 = vector.shape_cast %25 : vector<1xf32> to vector<1x1x1xf32>
      %27 = vector.extract %26[0, 0, 0] : f32 from vector<1x1x1xf32>
      %c0_14 = arith.constant 0 : index
      %c0_15 = arith.constant 0 : index
      %28 = memref.load %arg4[%c0_14, %c0_15] : memref<1x1xf32, #tpu.memory_space<smem>>
      memref.store %27, %arg4[%c0_14, %c0_15] : memref<1x1xf32, #tpu.memory_space<smem>>
    } else {
    }
    return
  }
  func.func @transform_0(%arg0: i32, %arg1: i32) -> (i32, i32) {
    %c1_i32 = arith.constant 1 : i32
    %0 = arith.muli %arg0, %c1_i32 : i32
    %1 = arith.addi %0, %arg1 : i32
    %c0_i32 = arith.constant 0 : i32
    %2 = arith.minsi %1, %c0_i32 : i32
    %c0_i32_0 = arith.constant 0 : i32
    %c0_i32_1 = arith.constant 0 : i32
    return %2, %c0_i32_0 : i32, i32
  }
  func.func @transform_1(%arg0: i32, %arg1: i32) -> (i32, i32) {
    %c1_i32 = arith.constant 1 : i32
    %0 = arith.muli %arg0, %c1_i32 : i32
    %1 = arith.addi %0, %arg1 : i32
    %c0_i32 = arith.constant 0 : i32
    %2 = arith.minsi %1, %c0_i32 : i32
    %c0_i32_0 = arith.constant 0 : i32
    %c0_i32_1 = arith.constant 0 : i32
    return %2, %c0_i32_0 : i32, i32
  }
  func.func @transform_2(%arg0: i32, %arg1: i32) -> (i32, i32) {
    %c0_i32 = arith.constant 0 : i32
    %c0_i32_0 = arith.constant 0 : i32
    return %arg0, %c0_i32 : i32, i32
  }
}

</mosaic_0001>

<llo_original>
// kernel: tpu_custom_call.1
$region0: #{tpu_custom_call.1}
  #allocation0 [shape = 'u32[]', space=smem, size = 0x4, offset = 0x4, fixed_abs, tag = 'smem constant byte address 0x4 - core index']
  #allocation1 [shape = 'u32[72,128]{1,0:T(1,128)}', space=vmem, size = 0x9000, scoped, tag = 'internal scratch']
  #allocation2 [shape = 'f32[16,128]{1,0:T(8,128)}', space=vmem, size = 0x2000, scoped, tag = 'scratch operand']
  %s0 = inlined_call_operand.hbm [shape: f32[16,128], index: 0, kind: input, shape index: {}]
  %s1 = inlined_call_operand.hbm [shape: f32[16,128], index: 1, kind: input, shape index: {}]
  %s2 = inlined_call_operand.hbm [shape: f32[1,1], index: 2, kind: output, shape index: {}]
  %s3 = sld [smem:[#allocation0]]
  $region34: #{tpu_custom_call.1} parent=0
    _
  %s5 = ssub.s32 1, %s3
  %s6 = scalar_select 0, %s5, %s3
  $region1: #{tpu_custom_call.1} parent=0
    #allocation3 [shape = 'u8[8192]{0}', space=vmem, size = 0x2000, scoped, tag = 'input window, operand 0, single buffered']
    #allocation4 [shape = 's32[1]{0}', space=sflag, size = 0x4, scoped, tag = 'scoped memory for tpu_custom_call.1']
    #allocation5 [shape = 's32[1]{0}', space=sflag, size = 0x4, scoped, tag = 'scoped memory for tpu_custom_call.1']
    #allocation6 [shape = 'u8[8192]{0}', space=vmem, size = 0x2000, scoped, tag = 'input window, operand 1, single buffered']
    #allocation7 [shape = 's32[1]{0}', space=sflag, size = 0x4, scoped, tag = 'scoped memory for tpu_custom_call.1']
    #allocation8 [shape = 'u8[512]{0}', space=smem, size = 0x200, scoped, tag = 'output window, operand 0, single buffered']
    %7 = vsyncpa [#allocation4], 0
    %8 = vsyncpa [#allocation7], 0
    %9 = vsyncpa [#allocation5], 0
    // Predicated region
    $region2: #{tpu_custom_call.1} parent=1 // pred_check
      _
    $region3: #{tpu_custom_call.1} parent=1 // pred_check_branch
      %11 = sbr.rel (0) target = $region5
    $region4: #{tpu_custom_call.1} parent=1 // pred_region
      %s12 = sadd.s32 0, 0
      %p13 = scmp.lt.s32.totalorder %s12, 0
      %s14 = scalar_select %p13, %s12, 0
      %s15 = smul.u32 2, %s14
      %17 = vsyncadd [#allocation4], 0
      %s18 = smul.addr %s15, 8
      %s19 = scalar_lea.hbm %s0, %s18
      %s20 = sshll.u32 %s19, 4
      %s21 = int_to_ptr.hbm [resolvable:$true] %s20
      %s22 = sshll.u32 [#allocation3], 4
      %s23 = int_to_ptr.vmem [resolvable:$true] %s22
      %28 = dma.hbm_to_vmem [thread:$0]  %s21, 256, %s23, [#allocation4], 128, 128, 8
    $region5: #{tpu_custom_call.1} parent=1 // pred_fallthru
      _
    // Predicated region
    $region6: #{tpu_custom_call.1} parent=1 // pred_check
      _
    $region7: #{tpu_custom_call.1} parent=1 // pred_check_branch
      %30 = sbr.rel (0) target = $region9
    $region8: #{tpu_custom_call.1} parent=1 // pred_region
      %s31 = sadd.s32 0, 0
      %p32 = scmp.lt.s32.totalorder %s31, 0
      %s33 = scalar_select %p32, %s31, 0
      %s34 = smul.u32 2, %s33
      %36 = vsyncadd [#allocation7], 0
      %s37 = smul.addr %s34, 8
      %s38 = scalar_lea.hbm %s1, %s37
      %s39 = sshll.u32 %s38, 4
      %s40 = int_to_ptr.hbm [resolvable:$true] %s39
      %s41 = sshll.u32 [#allocation6], 4
      %s42 = int_to_ptr.vmem [resolvable:$true] %s41
      %47 = dma.hbm_to_vmem [thread:$0]  %s40, 256, %s42, [#allocation7], 128, 128, 8
    $region9: #{tpu_custom_call.1} parent=1 // pred_fallthru
      _
    // Predicated region
    $region10: #{tpu_custom_call.1} parent=1 // pred_check
      _
    $region11: #{tpu_custom_call.1} parent=1 // pred_check_branch
      %49 = sbr.rel (0) target = $region13
    $region12: #{tpu_custom_call.1} parent=1 // pred_region
      %51 = dma.done [#allocation4], 256
    $region13: #{tpu_custom_call.1} parent=1 // pred_fallthru
      _
    // Predicated region
    $region14: #{tpu_custom_call.1} parent=1 // pred_check
      _
    $region15: #{tpu_custom_call.1} parent=1 // pred_check_branch
      %53 = sbr.rel (0) target = $region17
    $region16: #{tpu_custom_call.1} parent=1 // pred_region
      %55 = dma.done [#allocation7], 256
    $region17: #{tpu_custom_call.1} parent=1 // pred_fallthru
      _
    %s56 = sadd.s32 0, 0
    %p57 = scmp.lt.s32.totalorder %s56, 0
    %s58 = scalar_select %p57, %s56, 0
    %s59 = smul.u32 2, %s58
    %s60 = sadd.s32 0, 0
    %p61 = scmp.lt.s32.totalorder %s60, 0
    %s62 = scalar_select %p61, %s60, 0
    %s63 = smul.u32 2, %s62
    %p64 = scmp.eq.s32.totalorder 0, 0
    // Predicated region
    $region18: #{tpu_custom_call.1} parent=1 // pred_check
      %p65 = pneg %p64
    $region19: #{tpu_custom_call.1} parent=1 // pred_check_branch
      %67 = sbr.rel (%p65) target = $region21
    $region20: #{tpu_custom_call.1} parent=1 // pred_region
      %68 = vst [vmem:[#allocation2] sm:$0xff] 0.0
      %69 = vst [vmem:[#allocation2 + $0x8] sm:$0xff] 0.0
    $region21: #{tpu_custom_call.1} parent=1 // pred_fallthru
      _
    %s70 = sadd.s32 0, 0
    %s71 = smul.u32 %s70, 16
    %v72 = vlaneseq
    %v73 = vshrl.u32 %v72, 7
    %v74 = vadd.s32 %v73, 8
    %v75 = vstv %s71
    %v76 = vadd.s32 %v75, %v73
    %v77 = vadd.s32 %v75, %v74
    %vm78 = vcmp.lt.s32.totalorder %v76, 16
    %vm79 = vcmp.lt.s32.totalorder %v77, 16
    %v80 = vld [vmem:[#allocation3] sm:$0xff]
    %v81 = vld [vmem:[#allocation3 + $0x8] sm:$0xff]
    %v82 = vld [vmem:[#allocation6] sm:$0xff]
    %v83 = vld [vmem:[#allocation6 + $0x8] sm:$0xff]
    %v84 = vsub.f32 %v82, %v80
    %v85 = vsub.f32 %v83, %v81
    %v86 = vsel %vm78, %v84, 0.0
    %v87 = vsel %vm79, %v85, 0.0
    %v88 = vld [vmem:[#allocation2] sm:$0xff]
    %v89 = vld [vmem:[#allocation2 + $0x8] sm:$0xff]
    %v90 = vmul.f32 %v86, %v86
    %v91 = vmul.f32 %v87, %v87
    %v92 = vadd.f32 %v88, %v90
    %v93 = vadd.f32 %v89, %v91
    %94 = vst [vmem:[#allocation2] sm:$0xff] %v92
    %95 = vst [vmem:[#allocation2 + $0x8] sm:$0xff] %v93
    // Predicated region
    $region22: #{tpu_custom_call.1} parent=1 // pred_check
      %p96 = pneg %p64
    $region23: #{tpu_custom_call.1} parent=1 // pred_check_branch
      %98 = sbr.rel (%p96) target = $region25
    $region24: #{tpu_custom_call.1} parent=1 // pred_region
      %v99 = vld [vmem:[#allocation2] sm:$0xff]
      %v100 = vld [vmem:[#allocation2 + $0x8] sm:$0xff]
      %v101 = vadd.f32 %v99, %v100
      %102 = vadd.xlane.f32.xlu0 %v101
      %v103 = vpop.xlane.xlu0 %102
      %v104 = vrot.slane %v103, 4
      %v105 = vadd.f32 %v103, %v104
      %v106 = vrot.slane %v105, 2
      %v107 = vadd.f32 %v105, %v106
      %v108 = vrot.slane %v107, 1
      %v109 = vadd.f32 %v107, %v108
      %s110 = vtos %v109
      %s111 = scalar_lea.smem [#allocation8], 0
      %112 = sst [smem:[%s111]] %s110
    $region25: #{tpu_custom_call.1} parent=1 // pred_fallthru
      _
    // Predicated region
    $region26: #{tpu_custom_call.1} parent=1 // pred_check
      _
    $region27: #{tpu_custom_call.1} parent=1 // pred_check_branch
      %114 = sbr.rel (0) target = $region29
    $region28: #{tpu_custom_call.1} parent=1 // pred_region
      %116 = vsyncadd [#allocation5], 0
      %s118 = sshll.u32 %s2, 4
      %s119 = int_to_ptr.hbm [resolvable:$true] %s118
      %121 = dma.smem_to_hbm [#allocation8], 16, %s119, [#allocation5]
    $region29: #{tpu_custom_call.1} parent=1 // pred_fallthru
      _
    // Predicated region
    $region30: #{tpu_custom_call.1} parent=1 // pred_check
      _
    $region31: #{tpu_custom_call.1} parent=1 // pred_check_branch
      %123 = sbr.rel (0) target = $region33
    $region32: #{tpu_custom_call.1} parent=1 // pred_region
      %125 = dma.done [#allocation5], 16
    $region33: #{tpu_custom_call.1} parent=1 // pred_fallthru
      _
    %126 = sfence
    %127 = vsyncpa [#allocation4], 1
    %128 = vsyncpa [#allocation7], 1
    %129 = vsyncpa [#allocation5], 1

</llo_original>
